<compile_context>
chip_gen: v6e
topology: v6e:2x2x1
jax: 0.10.0
libtpu: 0.0.40
codegen_flags: <defaults>
</compile_context>

<pallas_src>
import math
import numpy as np
import jax
import jax.numpy as jnp
from jax.experimental import pallas as pl
from jax.experimental.pallas import tpu as pltpu


def _round_up(x, m):
    return ((x + m - 1) // m) * m


# ----------------------------- Pallas kernel ------------------------------ #

def _make_transform_kernel(h_first: bool):
    def kernel(scale_ref, bias_ref, x_ref, wh_ref, wwt_ref, o_ref):
        c = pl.program_id(1)
        # normalize: x * inv_std[c] - mean[c] * inv_std[c]  (scalars in SMEM)
        xn = (x_ref[0, 0] * scale_ref[c] + bias_ref[c]).astype(jnp.bfloat16)
        wh = wh_ref[0]        # [H_pad,    H_in_max]   bf16
        wwt = wwt_ref[0]      # [W_in_max, W_pad128]   bf16
        if h_first:
            tmp = jnp.dot(wh, xn, preferred_element_type=jnp.float32)       # [H_pad, W_in_max]
            out = jnp.dot(tmp.astype(jnp.bfloat16), wwt,
                          preferred_element_type=jnp.float32)               # [H_pad, W_pad128]
        else:
            tmp = jnp.dot(xn, wwt, preferred_element_type=jnp.float32)      # [H_in_max, W_pad128]
            out = jnp.dot(wh, tmp.astype(jnp.bfloat16),
                          preferred_element_type=jnp.float32)               # [H_pad, W_pad128]
        o_ref[0, 0] = out
    return kernel


# --------------------------- host-side helpers ----------------------------- #

def _bilinear_matrix(out_size, in_size, pad_to):
    """Interpolation matrix matching F.interpolate(mode='bilinear',
    align_corners=False, recompute_scale_factor=True): source scale is
    in_size / out_size, source index = (dst + 0.5) * scale - 0.5 clamped to 0.
    Rows beyond out_size stay zero (-> zero padding of the output)."""
    W = np.zeros((pad_to, in_size), dtype=np.float32)
    scale = in_size / out_size
    for i in range(out_size):
        src = max((i + 0.5) * scale - 0.5, 0.0)
        i0 = int(np.floor(src))
        i1 = min(i0 + 1, in_size - 1)
        frac = src - i0
        W[i, i0] += 1.0 - frac
        W[i, i1] += frac
    return W


def _resized_size(h, w, min_size_val, max_size_val):
    """Replicates torch: scale computed with float32 division, .item() to a
    python float, output size = floor(input * scale)."""
    min_hw = float(min(h, w))
    max_hw = float(max(h, w))
    scale = min(float(np.float32(min_size_val) / np.float32(min_hw)),
                float(np.float32(max_size_val) / np.float32(max_hw)))
    return int(math.floor(h * scale)), int(math.floor(w * scale))


def _resize_plan(images, min_size, max_size, size_divisible):
    min_size_val = float(min_size[-1])   # eval path: self.min_size[-1]
    max_size_val = float(max_size)
    resized = [_resized_size(img.shape[-2], img.shape[-1], min_size_val, max_size_val)
               for img in images]
    max_h = max(s[0] for s in resized)
    max_w = max(s[1] for s in resized)
    stride = float(size_divisible)
    h_pad = int(math.ceil(max_h / stride) * stride)
    w_pad = int(math.ceil(max_w / stride) * stride)
    return resized, h_pad, w_pad


# ------------------------------ module wrapper ----------------------------- #

def generalized_rcnn_transform(images, image_mean, image_std,
                               min_size=(20,), max_size=40.0,
                               size_divisible=32, targets=None):
    """Forward pass of GeneralizedRCNNTransform (eval mode, targets pass-through).

    images: list of [C, H, W] float32 arrays.
    Returns (batched_images [N, C, H_pad, W_pad], image_sizes list, targets).
    """
    n = len(images)
    c = int(images[0].shape[0])
    resized_sizes, h_pad, w_pad = _resize_plan(images, min_size, max_size, size_divisible)
    h_in_max = max(int(img.shape[-2]) for img in images)
    w_in_max = max(int(img.shape[-1]) for img in images)
    w_pad128 = _round_up(w_pad, 128)          # lane-dense kernel output width

    # Stack/pad inputs to a common [N, C, H_in_max, W_in_max] slab.
    x = jnp.stack([jnp.pad(img, ((0, 0),
                                 (0, h_in_max - int(img.shape[-2])),
                                 (0, w_in_max - int(img.shape[-1]))))
                   for img in images])

    # Stacked per-image interpolation matrices (bf16 for native MXU path).
    wh_np = np.zeros((n, h_pad, h_in_max), np.float32)
    wwt_np = np.zeros((n, w_in_max, w_pad128), np.float32)
    for i, (img, (oh, ow)) in enumerate(zip(images, resized_sizes)):
        h, w = int(img.shape[-2]), int(img.shape[-1])
        wh_np[i, :, :h] = _bilinear_matrix(oh, h, h_pad)
        wwt_np[i, :w, :] = _bilinear_matrix(ow, w, w_pad128).T
    wh = jnp.asarray(wh_np, jnp.bfloat16)
    wwt = jnp.asarray(wwt_np, jnp.bfloat16)

    mean_np = np.asarray(image_mean, np.float32)
    std_np = np.asarray(image_std, np.float32)
    scale = jnp.asarray(1.0 / std_np, jnp.float32)            # inv_std
    bias = jnp.asarray(-mean_np / std_np, jnp.float32)        # -mean * inv_std

    # Contract the larger dimension first -> smaller materialized intermediate.
    h_first = (h_pad * w_in_max) <= (h_in_max * w_pad128)

    out = pl.pallas_call(
        _make_transform_kernel(h_first),
        out_shape=jax.ShapeDtypeStruct((n, c, h_pad, w_pad128), jnp.float32),
        grid=(n, c),
        in_specs=[
            pl.BlockSpec(memory_space=pltpu.MemorySpace.SMEM),          # scale [C]
            pl.BlockSpec(memory_space=pltpu.MemorySpace.SMEM),          # bias  [C]
            pl.BlockSpec((1, 1, h_in_max, w_in_max),
                         lambda i, j: (i, j, 0, 0)),                    # x  [N,C,H,W]
            pl.BlockSpec((1, h_pad, h_in_max), lambda i, j: (i, 0, 0)), # Wh  per image
            pl.BlockSpec((1, w_in_max, w_pad128), lambda i, j: (i, 0, 0)),  # WwT per image
        ],
        out_specs=pl.BlockSpec((1, 1, h_pad, w_pad128),
                               lambda i, j: (i, j, 0, 0)),
        compiler_params=pltpu.CompilerParams(
            dimension_semantics=("parallel", "parallel")),
    )(scale, bias, x, wh, wwt)

    # Slice back from the lane-dense kernel width to the module's w_pad
    # (only materializes a copy when they differ).
    batched = out if w_pad128 == w_pad else out[:, :, :, :w_pad]
    # TODO(synk): target dict handling (boxes/masks/keypoints resize) is
    # host-side list/dict bookkeeping (resize_boxes in this module is an
    # identity); no kernel work — targets pass through unchanged.
    return batched, resized_sizes, targets


# ------------------------- plain-JAX reference ----------------------------- #

def _reference_transform(images, image_mean, image_std,
                         min_size=(20,), max_size=40.0, size_divisible=32):
    mean = jnp.asarray(image_mean, jnp.float32)
    std = jnp.asarray(image_std, jnp.float32)
    resized_sizes, h_pad, w_pad = _resize_plan(images, min_size, max_size, size_divisible)
    outs = []
    for img, (oh, ow) in zip(images, resized_sizes):
        _, h, w = img.shape
        whm = jnp.asarray(_bilinear_matrix(oh, h, h_pad))
        wwtm = jnp.asarray(_bilinear_matrix(ow, w, w_pad).T)
        xn = (img - mean[:, None, None]) / std[:, None, None]
        outs.append(jnp.einsum('oh,chw,wp->cop', whm, xn, wwtm))
    return jnp.stack(outs, axis=0)


# ----------------------------------- main ---------------------------------- #

if __name__ == "__main__":
    key = jax.random.PRNGKey(0)
    k0, k1 = jax.random.split(key)
    # Two images of different spatial sizes (in [0, 1), as the module expects).
    images = [
        jax.random.uniform(k0, (3, 16, 16), dtype=jnp.float32),
        jax.random.uniform(k1, (3, 12, 20), dtype=jnp.float32),
    ]
    image_mean = [0.485, 0.456, 0.406]
    image_std = [0.229, 0.224, 0.225]

    batched, image_sizes, targets = generalized_rcnn_transform(
        images, image_mean, image_std,
        min_size=(20,), max_size=40.0, size_divisible=32, targets=None)
    batched = jax.block_until_ready(batched)

    ref = _reference_transform(images, image_mean, image_std,
                               min_size=(20,), max_size=40.0, size_divisible=32)
    ref = jax.block_until_ready(ref)

    assert batched.shape == ref.shape, (batched.shape, ref.shape)
    # Kernel feeds the MXU bf16 operands (f32 accumulation); tolerance sized
    # for bf16 input/weight rounding vs the pure-f32 reference.
    np.testing.assert_allclose(np.asarray(batched), np.asarray(ref),
                               rtol=3e-2, atol=3e-2)
    print("KERNEL_OK")
</pallas_src>

<mosaic_0001>
module attributes {stable_mosaic.version = 11 : i64} {
  func.func @kernel(%arg0: i32, %arg1: i32, %arg2: memref<3xf32, #tpu.memory_space<smem>>, %arg3: memref<3xf32, #tpu.memory_space<smem>>, %arg4: memref<1x1x16x20xf32, #tpu.memory_space<vmem>>, %arg5: memref<1x32x16xbf16, #tpu.memory_space<vmem>>, %arg6: memref<1x20x128xbf16, #tpu.memory_space<vmem>>, %arg7: memref<1x1x32x128xf32, #tpu.memory_space<vmem>>) attributes {dimension_semantics = [#tpu.dimension_semantics<parallel>, #tpu.dimension_semantics<parallel>], iteration_bounds = array<i64: 2, 3>, scalar_prefetch = 0 : i64, scratch_operands = 0 : i64, tpu.core_type = #tpu.core_type<tc>, window_params = [{transform_indices = @transform_0, window_bounds = array<i64: 3>}, {transform_indices = @transform_1, window_bounds = array<i64: 3>}, {transform_indices = @transform_2, window_bounds = array<i64: 1, 1, 16, 20>}, {transform_indices = @transform_3, window_bounds = array<i64: 1, 32, 16>}, {transform_indices = @transform_4, window_bounds = array<i64: 1, 20, 128>}, {transform_indices = @transform_5, window_bounds = array<i64: 1, 1, 32, 128>}]} {
    %c0 = arith.constant 0 : index
    %c0_0 = arith.constant 0 : index
    %c0_1 = arith.constant 0 : index
    %c0_2 = arith.constant 0 : index
    %0 = vector.load %arg4[%c0, %c0_0, %c0_1, %c0_2] : memref<1x1x16x20xf32, #tpu.memory_space<vmem>>, vector<1x1x16x20xf32>
    %1 = vector.shape_cast %0 : vector<1x1x16x20xf32> to vector<16x20xf32>
    %2 = arith.index_cast %arg1 : i32 to index
    %3 = memref.load %arg2[%2] : memref<3xf32, #tpu.memory_space<smem>>
    %4 = vector.broadcast %3 : f32 to vector<16x20xf32>
    %5 = arith.mulf %1, %4 : vector<16x20xf32>
    %6 = arith.index_cast %arg1 : i32 to index
    %7 = memref.load %arg3[%6] : memref<3xf32, #tpu.memory_space<smem>>
    %8 = vector.broadcast %7 : f32 to vector<16x20xf32>
    %9 = arith.addf %5, %8 : vector<16x20xf32>
    %10 = arith.truncf %9 : vector<16x20xf32> to vector<16x20xbf16>
    %c0_3 = arith.constant 0 : index
    %c0_4 = arith.constant 0 : index
    %c0_5 = arith.constant 0 : index
    %11 = vector.load %arg5[%c0_3, %c0_4, %c0_5] : memref<1x32x16xbf16, #tpu.memory_space<vmem>>, vector<1x32x16xbf16>
    %12 = vector.shape_cast %11 : vector<1x32x16xbf16> to vector<32x16xbf16>
    %c0_6 = arith.constant 0 : index
    %c0_7 = arith.constant 0 : index
    %c0_8 = arith.constant 0 : index
    %13 = vector.load %arg6[%c0_6, %c0_7, %c0_8] : memref<1x20x128xbf16, #tpu.memory_space<vmem>>, vector<1x20x128xbf16>
    %14 = vector.shape_cast %13 : vector<1x20x128xbf16> to vector<20x128xbf16>
    %cst = arith.constant dense<0.000000e+00> : vector<32x20xf32>
    %15 = tpu.matmul %12, %10, %cst {dimension_numbers = #tpu.dot_dimension_numbers<[1], [0], [0], [1], [0, 0, 1, 1], [], []>} : vector<32x16xbf16>, vector<16x20xbf16>, vector<32x20xf32> -> vector<32x20xf32>
    %16 = arith.truncf %15 : vector<32x20xf32> to vector<32x20xbf16>
    %cst_9 = arith.constant dense<0.000000e+00> : vector<32x128xf32>
    %17 = tpu.matmul %16, %14, %cst_9 {dimension_numbers = #tpu.dot_dimension_numbers<[1], [0], [0], [1], [0, 0, 1, 1], [], []>} : vector<32x20xbf16>, vector<20x128xbf16>, vector<32x128xf32> -> vector<32x128xf32>
    %c0_10 = arith.constant 0 : index
    %c0_11 = arith.constant 0 : index
    %c0_12 = arith.constant 0 : index
    %c0_13 = arith.constant 0 : index
    %18 = vector.load %arg7[%c0_10, %c0_11, %c0_12, %c0_13] : memref<1x1x32x128xf32, #tpu.memory_space<vmem>>, vector<1x1x32x128xf32>
    %19 = vector.shape_cast %18 : vector<1x1x32x128xf32> to vector<32x128xf32>
    %20 = vector.shape_cast %17 : vector<32x128xf32> to vector<1x1x32x128xf32>
    tpu.vector_store %arg7[%c0_10, %c0_11, %c0_12, %c0_13], %20 {strides = array<i32>} : memref<1x1x32x128xf32, #tpu.memory_space<vmem>>, vector<1x1x32x128xf32>,
    return
  }
  func.func @transform_0(%arg0: i32, %arg1: i32) -> i32 {
    %c0_i32 = arith.constant 0 : i32
    %c0_i32_0 = arith.constant 0 : i32
    return %c0_i32 : i32
  }
  func.func @transform_1(%arg0: i32, %arg1: i32) -> i32 {
    %c0_i32 = arith.constant 0 : i32
    %c0_i32_0 = arith.constant 0 : i32
    return %c0_i32 : i32
  }
  func.func @transform_2(%arg0: i32, %arg1: i32) -> (i32, i32, i32, i32) {
    %c0_i32 = arith.constant 0 : i32
    %c0_i32_0 = arith.constant 0 : i32
    %c0_i32_1 = arith.constant 0 : i32
    return %arg0, %arg1, %c0_i32, %c0_i32_0 : i32, i32, i32, i32
  }
  func.func @transform_3(%arg0: i32, %arg1: i32) -> (i32, i32, i32) {
    %c0_i32 = arith.constant 0 : i32
    %c0_i32_0 = arith.constant 0 : i32
    %c0_i32_1 = arith.constant 0 : i32
    return %arg0, %c0_i32, %c0_i32_0 : i32, i32, i32
  }
  func.func @transform_4(%arg0: i32, %arg1: i32) -> (i32, i32, i32) {
    %c0_i32 = arith.constant 0 : i32
    %c0_i32_0 = arith.constant 0 : i32
    %c0_i32_1 = arith.constant 0 : i32
    return %arg0, %c0_i32, %c0_i32_0 : i32, i32, i32
  }
  func.func @transform_5(%arg0: i32, %arg1: i32) -> (i32, i32, i32, i32) {
    %c0_i32 = arith.constant 0 : i32
    %c0_i32_0 = arith.constant 0 : i32
    %c0_i32_1 = arith.constant 0 : i32
    return %arg0, %arg1, %c0_i32, %c0_i32_0 : i32, i32, i32, i32
  }
}

</mosaic_0001>

<llo_original>
// kernel: tpu_custom_call.1
$region0: #{tpu_custom_call.1}
  #allocation0 [shape = 'u32[]', space=smem, size = 0x4, offset = 0x4, fixed_abs, tag = 'smem constant byte address 0x4 - core index']
  #allocation1 [shape = 'u32[144,128]{1,0:T(1,128)}', space=vmem, size = 0x12000, scoped, tag = 'internal scratch']
  %s0 = inlined_call_operand.vmem [shape: f32[3], index: 0, kind: input, shape index: {}]
  %s1 = inlined_call_operand.vmem [shape: f32[3], index: 1, kind: input, shape index: {}]
  %s2 = inlined_call_operand.hbm [shape: f32[2,3,16,20], index: 2, kind: input, shape index: {}]
  %s3 = inlined_call_operand.vmem [shape: bf16[2,32,16], index: 3, kind: input, shape index: {}]
  %s4 = inlined_call_operand.vmem [shape: bf16[2,20,128], index: 4, kind: input, shape index: {}]
  %s5 = inlined_call_operand.hbm [shape: f32[2,3,32,128], index: 5, kind: output, shape index: {}]
  %s6 = sld [smem:[#allocation0]]
  $region65: #{tpu_custom_call.1} parent=0
    _
  %s8 = ssub.s32 1, %s6
  %s9 = scalar_select 0, %s8, %s6
  $region1: #{tpu_custom_call.1} parent=0
    #allocation2 [shape = 'u8[512]{0}', space=smem, size = 0x200, scoped, tag = 'input window, operand 0, single buffered']
    #allocation3 [shape = 's32[2]{0}', space=sflag, size = 0x8, scoped, tag = 'scoped memory for tpu_custom_call.1']
    #allocation4 [shape = 's32[2]{0}', space=sflag, size = 0x8, scoped, tag = 'scoped memory for tpu_custom_call.1']
    #allocation5 [shape = 's32[2]{0}', space=sflag, size = 0x8, scoped, tag = 'scoped memory for tpu_custom_call.1']
    #allocation6 [shape = 'u8[512]{0}', space=smem, size = 0x200, scoped, tag = 'input window, operand 1, single buffered']
    #allocation7 [shape = 's32[1]{0}', space=sflag, size = 0x4, scoped, tag = 'scoped memory for tpu_custom_call.1']
    #allocation8 [shape = 'u8[16384]{0}', space=vmem, size = 0x4000, scoped, tag = 'input window, operand 2']
    #allocation9 [shape = 'u8[32768]{0}', space=vmem, size = 0x8000, scoped, tag = 'output window, operand 0']
    %10 = vsyncpa [#allocation5], 0
    %11 = vsyncpa [#allocation7], 0
    %12 = vsyncpa [#allocation3], 0
    %s13 = scalar_lea.sflag [#allocation3], 1
    %14 = vsyncpa %s13, 0
    %15 = vsyncpa [#allocation4], 0
    %s16 = scalar_lea.sflag [#allocation4], 1
    %17 = vsyncpa %s16, 0
    loop: start=0, step=1, limit=8
    $region2: #{tpu_custom_call.1} parent=1 // loop_pre_header
      _
    $region3: #{tpu_custom_call.1} parent=1 // loop_header
      %s19 = sphi 0, %s23
      %p20 = scmp.ge.s32.totalorder %s19, 8
      %s26 = sphi 0, %s38
      %s27 = sphi 0, %s34
      %s28 = sphi 0, %s26
      %s29 = sphi 0, %s27
      %s30 = sphi 0, %s28
      %s31 = sphi 0, %s29
      %s39 = sphi 0, %s39
      %s41 = sphi 0, %s39
      %s42 = sphi 0, %s41
      %s56 = sphi 0, %s42
      %s60 = sphi 0, %s60
      %s62 = sphi 0, %s60
      %s63 = sphi 0, %s62
      %s77 = sphi 0, %s63
      %s85 = sphi 0, %s87
      %s88 = sphi 0, %s85
      %s89 = sphi 0, %s88
      %s105 = sphi 0, %s89
      %s111 = sphi 0, %s113
      %s114 = sphi 0, %s111
      %s115 = sphi 0, %s114
      %s131 = sphi 0, %s115
      %s137 = sphi 0, %s139
      %s140 = sphi 0, %s137
      %s141 = sphi 0, %s140
      %s157 = sphi 0, %s141
      %s165 = sphi 0, %s167
      %s168 = sphi 0, %s165
      %s169 = sphi 0, %s168
      %s185 = sphi 0, %s169
    $region4: #{tpu_custom_call.1} parent=1 // loop_header_branch
      %22 = sbr.rel (%p20) target = $region8
    $region5: #{tpu_custom_call.1} parent=1 // loop_body
      %s24 = ssub.s32 %s19, 1
      %s25 = ssub.s32 %s19, 2
      %s32 = sadd.s32 1, %s27
      %p33 = scmp.ge.s32.totalorder %s32, 3
      %s34 = scalar_select %p33, 0, %s32
      %s35 = sadd.s32 1, %s26
      %s36 = scalar_select %p33, %s35, %s26
      %p37 = scmp.ge.s32.totalorder %s36, 2
      %s38 = scalar_select %p37, 0, %s36
      %s40 = sadd.s32 %s39, 1
      %p43 = scmp.eq.s32.totalorder %s19, 5
      %p44 = scmp.ne.s32.totalorder %s39, %s41
      %p45 = scmp.eq.s32.totalorder %s19, 0
      %p46 = por %p44, %p45
      %p47 = scmp.ne.s32.totalorder %s39, %s41
      %p48 = scmp.eq.s32.totalorder %s24, 5
      %p49 = por %p47, %p48
      %p50 = scmp.ne.s32.totalorder %s41, %s42
      %p51 = scmp.eq.s32.totalorder %s24, 0
      %p52 = por %p50, %p51
      %p53 = scmp.ne.s32.totalorder %s41, %s42
      %p54 = scmp.eq.s32.totalorder %s25, 5
      %p55 = por %p53, %p54
      %p57 = scmp.ne.s32.totalorder %s42, %s56
      %p58 = scmp.eq.s32.totalorder %s25, 0
      %p59 = por %p57, %p58
      %s61 = sadd.s32 %s60, 1
      %p64 = scmp.eq.s32.totalorder %s19, 5
      %p65 = scmp.ne.s32.totalorder %s60, %s62
      %p66 = scmp.eq.s32.totalorder %s19, 0
      %p67 = por %p65, %p66
      %p68 = scmp.ne.s32.totalorder %s60, %s62
      %p69 = scmp.eq.s32.totalorder %s24, 5
      %p70 = por %p68, %p69
      %p71 = scmp.ne.s32.totalorder %s62, %s63
      %p72 = scmp.eq.s32.totalorder %s24, 0
      %p73 = por %p71, %p72
      %p74 = scmp.ne.s32.totalorder %s62, %s63
      %p75 = scmp.eq.s32.totalorder %s25, 5
      %p76 = por %p74, %p75
      %p78 = scmp.ne.s32.totalorder %s63, %s77
      %p79 = scmp.eq.s32.totalorder %s25, 0
      %p80 = por %p78, %p79
      %s81 = ssub.s32 %s26, %s38
      %s82 = ssub.s32 %s27, %s34
      %s83 = sor.u32 %s81, %s82
      %p84 = scmp.eq.s32.totalorder %s83, 0
      %s86 = sadd.s32 %s85, 1
      %s87 = scalar_select %p84, %s85, %s86
      %p90 = pneg %p84
      %p91 = scmp.eq.s32.totalorder %s19, 5
      %p92 = por %p90, %p91
      %p93 = scmp.ne.s32.totalorder %s85, %s88
      %p94 = scmp.eq.s32.totalorder %s19, 0
      %p95 = por %p93, %p94
      %p96 = scmp.ne.s32.totalorder %s85, %s88
      %p97 = scmp.eq.s32.totalorder %s24, 5
      %p98 = por %p96, %p97
      %p99 = scmp.ne.s32.totalorder %s88, %s89
      %p100 = scmp.eq.s32.totalorder %s24, 0
      %p101 = por %p99, %p100
      %p102 = scmp.ne.s32.totalorder %s88, %s89
      %p103 = scmp.eq.s32.totalorder %s25, 5
      %p104 = por %p102, %p103
      %p106 = scmp.ne.s32.totalorder %s89, %s105
      %p107 = scmp.eq.s32.totalorder %s25, 0
      %p108 = por %p106, %p107
      %s109 = ssub.s32 %s26, %s38
      %p110 = scmp.eq.s32.totalorder %s109, 0
      %s112 = sadd.s32 %s111, 1
      %s113 = scalar_select %p110, %s111, %s112
      %p116 = pneg %p110
      %p117 = scmp.eq.s32.totalorder %s19, 5
      %p118 = por %p116, %p117
      %p119 = scmp.ne.s32.totalorder %s111, %s114
      %p120 = scmp.eq.s32.totalorder %s19, 0
      %p121 = por %p119, %p120
      %p122 = scmp.ne.s32.totalorder %s111, %s114
      %p123 = scmp.eq.s32.totalorder %s24, 5
      %p124 = por %p122, %p123
      %p125 = scmp.ne.s32.totalorder %s114, %s115
      %p126 = scmp.eq.s32.totalorder %s24, 0
      %p127 = por %p125, %p126
      %p128 = scmp.ne.s32.totalorder %s114, %s115
      %p129 = scmp.eq.s32.totalorder %s25, 5
      %p130 = por %p128, %p129
      %p132 = scmp.ne.s32.totalorder %s115, %s131
      %p133 = scmp.eq.s32.totalorder %s25, 0
      %p134 = por %p132, %p133
      %s135 = ssub.s32 %s26, %s38
      %p136 = scmp.eq.s32.totalorder %s135, 0
      %s138 = sadd.s32 %s137, 1
      %s139 = scalar_select %p136, %s137, %s138
      %p142 = pneg %p136
      %p143 = scmp.eq.s32.totalorder %s19, 5
      %p144 = por %p142, %p143
      %p145 = scmp.ne.s32.totalorder %s137, %s140
      %p146 = scmp.eq.s32.totalorder %s19, 0
      %p147 = por %p145, %p146
      %p148 = scmp.ne.s32.totalorder %s137, %s140
      %p149 = scmp.eq.s32.totalorder %s24, 5
      %p150 = por %p148, %p149
      %p151 = scmp.ne.s32.totalorder %s140, %s141
      %p152 = scmp.eq.s32.totalorder %s24, 0
      %p153 = por %p151, %p152
      %p154 = scmp.ne.s32.totalorder %s140, %s141
      %p155 = scmp.eq.s32.totalorder %s25, 5
      %p156 = por %p154, %p155
      %p158 = scmp.ne.s32.totalorder %s141, %s157
      %p159 = scmp.eq.s32.totalorder %s25, 0
      %p160 = por %p158, %p159
      %s161 = ssub.s32 %s26, %s38
      %s162 = ssub.s32 %s27, %s34
      %s163 = sor.u32 %s161, %s162
      %p164 = scmp.eq.s32.totalorder %s163, 0
      %s166 = sadd.s32 %s165, 1
      %s167 = scalar_select %p164, %s165, %s166
      %p170 = pneg %p164
      %p171 = scmp.eq.s32.totalorder %s19, 5
      %p172 = por %p170, %p171
      %p173 = scmp.ne.s32.totalorder %s165, %s168
      %p174 = scmp.eq.s32.totalorder %s19, 0
      %p175 = por %p173, %p174
      %p176 = scmp.ne.s32.totalorder %s165, %s168
      %p177 = scmp.eq.s32.totalorder %s24, 5
      %p178 = por %p176, %p177
      %p179 = scmp.ne.s32.totalorder %s168, %s169
      %p180 = scmp.eq.s32.totalorder %s24, 0
      %p181 = por %p179, %p180
      %p182 = scmp.ne.s32.totalorder %s168, %s169
      %p183 = scmp.eq.s32.totalorder %s25, 5
      %p184 = por %p182, %p183
      %p186 = scmp.ne.s32.totalorder %s169, %s185
      %p187 = scmp.eq.s32.totalorder %s25, 0
      %p188 = por %p186, %p187
      %p189 = scmp.le.s32.totalorder 1, %s19
      %p190 = scmp.lt.s32.totalorder %s19, 7
      %p191 = pnand %p189, %p190
      %p192 = pneg %p191
      // Predicated region
      $region9: #{tpu_custom_call.1} parent=5 // pred_check
        _
      $region10: #{tpu_custom_call.1} parent=5 // pred_check_branch
        %194 = sbr.rel (%p191) target = $region12
      $region11: #{tpu_custom_call.1} parent=5 // pred_region
        %s195 = ssub.s32 %s19, 1
        // Predicated region
        $region13: #{tpu_custom_call.1} parent=11 // pred_check
          %p196 = pneg %p52
        $region14: #{tpu_custom_call.1} parent=11 // pred_check_branch
          %198 = sbr.rel (%p196) target = $region16
        $region15: #{tpu_custom_call.1} parent=11 // pred_region
          %s200 = ssub.s32 16, 16
          %201 = vsyncadd [#allocation5], %s200
          %s203 = sshll.u32 %s0, 4
          %s204 = int_to_ptr.vmem [resolvable:$true] %s203
          %206 = dma.vmem_to_smem %s204, 16, [#allocation2], [#allocation5]
        $region16: #{tpu_custom_call.1} parent=11 // pred_fallthru
          _
        // Predicated region
        $region17: #{tpu_custom_call.1} parent=11 // pred_check
          %p207 = pneg %p73
        $region18: #{tpu_custom_call.1} parent=11 // pred_check_branch
          %209 = sbr.rel (%p207) target = $region20
        $region19: #{tpu_custom_call.1} parent=11 // pred_region
          %s211 = ssub.s32 16, 16
          %212 = vsyncadd [#allocation7], %s211
          %s214 = sshll.u32 %s1, 4
          %s215 = int_to_ptr.vmem [resolvable:$true] %s214
          %217 = dma.vmem_to_smem %s215, 16, [#allocation6], [#allocation7]
        $region20: #{tpu_custom_call.1} parent=11 // pred_fallthru
          _
      $region12: #{tpu_custom_call.1} parent=5 // pred_fallthru
        _
      %p218 = scmp.lt.s32.totalorder %s19, 6
      // Predicated region
      $region21: #{tpu_custom_call.1} parent=5 // pred_check
        %p219 = pneg %p218
      $region22: #{tpu_custom_call.1} parent=5 // pred_check_branch
        %221 = sbr.rel (%p219) target = $region24
      $region23: #{tpu_custom_call.1} parent=5 // pred_region
        // Predicated region
        $region25: #{tpu_custom_call.1} parent=23 // pred_check
          %p222 = pneg %p95
        $region26: #{tpu_custom_call.1} parent=23 // pred_check_branch
          %224 = sbr.rel (%p222) target = $region28
        $region27: #{tpu_custom_call.1} parent=23 // pred_region
          %s225 = sand.u32 %s85, 1
          %s226 = scalar_lea.sflag [#allocation3], %s225
          %s227 = sand.u32 %s85, 1
          %s228 = smul.addr %s227, 16
          %s229 = scalar_lea.vmem [#allocation8], %s228
          %s231 = ssub.s32 256, 256
          %232 = vsyncadd %s226, %s231
          %s233 = smul.addr %s27, 2
          %s234 = smul.addr %s26, 6
          %s235 = sadd.s32 %s233, %s234
          %s236 = smul.addr %s235, 128
          %s237 = scalar_lea.hbm %s2, %s236
          %s238 = sshll.u32 %s229, 4
          %s239 = int_to_ptr.vmem [resolvable:$true] %s238
          %244 = dma.hbm_to_vmem [thread:$0]  %s237, 256, %s239, %s226, 128, 128, 8
        $region28: #{tpu_custom_call.1} parent=23 // pred_fallthru
          _
        // Predicated region
        $region29: #{tpu_custom_call.1} parent=23 // pred_check
          %p245 = pneg %p121
        $region30: #{tpu_custom_call.1} parent=23 // pred_check_branch
          %247 = sbr.rel (%p245) target = $region32
        $region31: #{tpu_custom_call.1} parent=23 // pred_region
          %p248 = scmp.lt.s32.totalorder %s26, 1
          %s249 = scalar_select %p248, %s26, 1
          %s250 = smul.addr %s249, 4
          %s251 = smul.addr %s250, 4
          %s252 = scalar_lea.vmem %s3, %s251
        $region32: #{tpu_custom_call.1} parent=23 // pred_fallthru
          _
        // Predicated region
        $region33: #{tpu_custom_call.1} parent=23 // pred_check
          %p253 = pneg %p147
        $region34: #{tpu_custom_call.1} parent=23 // pred_check_branch
          %255 = sbr.rel (%p253) target = $region36
        $region35: #{tpu_custom_call.1} parent=23 // pred_region
          %p256 = scmp.lt.s32.totalorder %s26, 1
          %s257 = scalar_select %p256, %s26, 1
          %s258 = smul.addr %s257, 3
          %s259 = smul.addr %s258, 4
          %s260 = scalar_lea.vmem %s4, %s259
        $region36: #{tpu_custom_call.1} parent=23 // pred_fallthru
          _
      $region24: #{tpu_custom_call.1} parent=5 // pred_fallthru
        _
      %p261 = scmp.le.s32.totalorder 1, %s19
      %p262 = scmp.lt.s32.totalorder %s19, 7
      %p263 = pnand %p261, %p262
      %p264 = pneg %p263
      // Predicated region
      $region37: #{tpu_custom_call.1} parent=5 // pred_check
        _
      $region38: #{tpu_custom_call.1} parent=5 // pred_check_branch
        %266 = sbr.rel (%p263) target = $region40
      $region39: #{tpu_custom_call.1} parent=5 // pred_region
        %s267 = ssub.s32 %s19, 1
        // Predicated region
        $region41: #{tpu_custom_call.1} parent=39 // pred_check
          %p268 = pneg %p52
        $region42: #{tpu_custom_call.1} parent=39 // pred_check_branch
          %270 = sbr.rel (%p268) target = $region44
        $region43: #{tpu_custom_call.1} parent=39 // pred_region
          %271 = dma.done [#allocation5], 16
        $region44: #{tpu_custom_call.1} parent=39 // pred_fallthru
          _
        // Predicated region
        $region45: #{tpu_custom_call.1} parent=39 // pred_check
          %p272 = pneg %p73
        $region46: #{tpu_custom_call.1} parent=39 // pred_check_branch
          %274 = sbr.rel (%p272) target = $region48
        $region47: #{tpu_custom_call.1} parent=39 // pred_region
          %275 = dma.done [#allocation7], 16
        $region48: #{tpu_custom_call.1} parent=39 // pred_fallthru
          _
        %s276 = sand.u32 %s88, 1
        %s277 = scalar_lea.sflag [#allocation3], %s276
        %s278 = sand.u32 %s88, 1
        %s279 = smul.addr %s278, 16
        %s280 = scalar_lea.vmem [#allocation8], %s279
        // Predicated region
        $region49: #{tpu_custom_call.1} parent=39 // pred_check
          %p281 = pneg %p101
        $region50: #{tpu_custom_call.1} parent=39 // pred_check_branch
          %283 = sbr.rel (%p281) target = $region52
        $region51: #{tpu_custom_call.1} parent=39 // pred_region
          %284 = dma.done %s277, 256
        $region52: #{tpu_custom_call.1} parent=39 // pred_fallthru
          _
        %285 = sfence
        %p286 = pneg %p52
        %p287 = pneg %p49
        %p288 = pneg %p73
        %p289 = pneg %p70
        %s290 = sand.u32 %s88, 1
        %s291 = scalar_lea.sflag [#allocation3], %s290
        %s292 = sand.u32 %s88, 1
        %s293 = smul.addr %s292, 16
        %s294 = scalar_lea.vmem [#allocation8], %s293
        %p295 = pneg %p101
        %p296 = pneg %p98
        %p297 = scmp.lt.s32.totalorder %s28, 1
        %s298 = scalar_select %p297, %s28, 1
        %s299 = smul.addr %s298, 4
        %s300 = smul.addr %s299, 4
        %s301 = scalar_lea.vmem %s3, %s300
        %p302 = pneg %p127
        %p303 = pneg %p124
        %p304 = scmp.lt.s32.totalorder %s28, 1
        %s305 = scalar_select %p304, %s28, 1
        %s306 = smul.addr %s305, 3
        %s307 = smul.addr %s306, 4
        %s308 = scalar_lea.vmem %s4, %s307
        %p309 = pneg %p153
        %p310 = pneg %p150
        %p311 = pneg %p181
        %p312 = pneg %p178
        %s313 = sand.u32 %s168, 1
        %s314 = scalar_lea.sflag [#allocation4], %s313
        %s315 = sand.u32 %s168, 1
        %s316 = smul.addr %s315, 32
        %s317 = scalar_lea.vmem [#allocation9], %s316
        %p318 = scmp.lt.s32.totalorder %s28, 1
        %s319 = scalar_select %p318, %s28, 1
        %s320 = smul.addr %s319, 4
        %s321 = smul.addr %s320, 4
        %s322 = scalar_lea.vmem %s3, %s321
        %p323 = scmp.lt.s32.totalorder %s28, 1
        %s324 = scalar_select %p323, %s28, 1
        %s325 = smul.addr %s324, 3
        %s326 = smul.addr %s325, 4
        %s327 = scalar_lea.vmem %s4, %s326
        %v329 = vld [vmem:[%s280] sm:$0xff]
        %v330 = vld [vmem:[%s280 + $0x8] sm:$0xff]
        %s331 = sld [smem:[#allocation2 + %s29]]
        %v332 = vstv %s331
        %v333 = vmul.f32 %v329, %v332
        %v334 = vmul.f32 %v330, %v332
        %s335 = sld [smem:[#allocation6 + %s29]]
        %v336 = vstv %s335
        %v337 = vadd.f32 %v333, %v336
        %v338 = vadd.f32 %v334, %v336
        %v339 = vpack.c.bf16 %v338, %v337
        %v340 = vld [vmem:[%s322] sm:$0xf]
        %v341 = vld [vmem:[%s322 + $0x4] sm:$0xf]
        %v342 = vld [vmem:[%s322 + $0x8] sm:$0xf]
        %v343 = vld [vmem:[%s322 + $0xc] sm:$0xf]
        %v344 = vld [vmem:[%s327] sm:$0xf]
        %v345 = vld [vmem:[%s327 + $0x4] sm:$0xf]
        %v346 = vld [vmem:[%s327 + $0x8] sm:$0x3]
        %v351 = vunpack.c.l.b16 %v340
        %v352 = vunpack.c.l.b16 %v341
        %v353 = vunpack.c.l.b16 %v342
        %v354 = vunpack.c.l.b16 %v343
        %v355 = vpack.c.b16 %v352, %v351
        %v356 = vpack.c.b16 %v354, %v353
        %vm357 = vcmask 130048
        %v359 = vsel %vm357, %v355, 0
        %v362 = vsel %vm357, %v356, 0
        %364 = vmatprep.subr.bf16.mxu0 0
        %365 = vmatpush1.bf16.msra.mxu0 0
        %366 = vmatprep.subr.bf16.mxu0 0
        %367 = vmatpush1.bf16.msra.mxu0 0
        %368 = vmatprep.subr.bf16.mxu0 0
        %369 = vmatpush1.bf16.msra.mxu0 0
        %370 = vmatprep.subr.bf16.mxu0 0
        %371 = vmatpush1.bf16.msra.mxu0 0
        %372 = vmatprep.subr.bf16.mxu0 0
        %373 = vmatpush1.bf16.msra.mxu0 0
        %374 = vmatprep.subr.bf16.mxu0 0
        %375 = vmatpush1.bf16.msra.mxu0 0
        %376 = vmatprep.subr.bf16.mxu0 0
        %377 = vmatpush1.bf16.msra.mxu0 0
        %378 = vmatprep.subr.bf16.mxu0 0
        %379 = vmatpush1.bf16.msra.mxu0 %v339
        %380 = vmatprep.subr.bf16.mxu0 0
        %381 = vmatpush2.bf16.msra.mxu0 0
        %382 = vmatprep.subr.bf16.mxu0 0
        %383 = vmatpush2.bf16.msra.mxu0 0
        %384 = vmatprep.subr.bf16.mxu0 0
        %385 = vmatpush2.bf16.msra.mxu0 0
        %386 = vmatprep.subr.bf16.mxu0 0
        %387 = vmatpush2.bf16.msra.mxu0 0
        %388 = vmatprep.subr.bf16.mxu0 0
        %389 = vmatpush2.bf16.msra.mxu0 0
        %390 = vmatprep.subr.bf16.mxu0 0
        %391 = vmatpush2.bf16.msra.mxu0 0
        %392 = vmatprep.subr.bf16.mxu0 0
        %393 = vmatpush2.bf16.msra.mxu0 0
        %394 = vmatprep.subr.bf16.mxu0 0
        %395 = vmatpush2.bf16.msra.mxu0 0
        %396 = vmatprep.mubr.bf16.mxu0 0
        %397 = vmatmul.mubr.bf16.gmra.mxu0 %v359
        %v398 = vpop.f32.mrf.mxu0
        %v399 = vadd.f32 0.0, %v398
        %v400 = vpop.f32.mrf.mxu0
        %v401 = vpop.f32.mrf.mxu0
        %v402 = vadd.f32 0.0, %v401
        %v403 = vpop.f32.mrf.mxu0
        %404 = vmatprep.mubr.bf16.mxu0 0
        %405 = vmatmul.mubr.bf16.gmra.mxu0 %v362
        %v406 = vpop.f32.mrf.mxu0
        %v407 = vadd.f32 0.0, %v406
        %v408 = vpop.f32.mrf.mxu0
        %v409 = vpop.f32.mrf.mxu0
        %v410 = vadd.f32 0.0, %v409
        %v411 = vpop.f32.mrf.mxu0
        %412 = vdwg.mxu0
        %v413 = vpack.c.bf16 %v402, %v399
        %v414 = vpack.c.bf16 %v410, %v407
        %v418 = vunpack.c.l.b16 %v344
        %v419 = vunpack.c.l.b16 %v345
        %v420 = vunpack.c.l.b16 %v346
        %v421 = vpack.c.b16 %v419, %v418
        %v422 = vpack.c.b16 %v420, %v420
        %vm424 = vcmask 162816
        %v426 = vsel %vm424, %v413, 0
        %v429 = vsel %vm424, %v414, 0
        %vm431 = vcmask 1041408
        %v433 = vsel %vm431, %v422, 0
        %435 = vmatprep.subr.bf16.mxu0 0
        %436 = vmatpush1.bf16.msra.mxu0 0
        %437 = vmatprep.subr.bf16.mxu0 0
        %438 = vmatpush1.bf16.msra.mxu0 0
        %439 = vmatprep.subr.bf16.mxu0 0
        %440 = vmatpush1.bf16.msra.mxu0 0
        %441 = vmatprep.subr.bf16.mxu0 0
        %442 = vmatpush1.bf16.msra.mxu0 0
        %443 = vmatprep.subr.bf16.mxu0 0
        %444 = vmatpush1.bf16.msra.mxu0 0
        %445 = vmatprep.subr.bf16.mxu0 0
        %446 = vmatpush1.bf16.msra.mxu0 0
        %447 = vmatprep.subr.bf16.mxu0 0
        %448 = vmatpush1.bf16.msra.mxu0 %v433
        %449 = vmatprep.subr.bf16.mxu0 0
        %450 = vmatpush1.bf16.msra.mxu0 %v421
        %451 = vmatprep.subr.bf16.mxu0 0
        %452 = vmatpush2.bf16.msra.mxu0 0
        %453 = vmatprep.subr.bf16.mxu0 0
        %454 = vmatpush2.bf16.msra.mxu0 0
        %455 = vmatprep.subr.bf16.mxu0 0
        %456 = vmatpush2.bf16.msra.mxu0 0
        %457 = vmatprep.subr.bf16.mxu0 0
        %458 = vmatpush2.bf16.msra.mxu0 0
        %459 = vmatprep.subr.bf16.mxu0 0
        %460 = vmatpush2.bf16.msra.mxu0 0
        %461 = vmatprep.subr.bf16.mxu0 0
        %462 = vmatpush2.bf16.msra.mxu0 0
        %463 = vmatprep.subr.bf16.mxu0 0
        %464 = vmatpush2.bf16.msra.mxu0 0
        %465 = vmatprep.subr.bf16.mxu0 0
        %466 = vmatpush2.bf16.msra.mxu0 0
        %467 = vmatprep.mubr.bf16.mxu0 0
        %468 = vmatmul.mubr.bf16.gmra.mxu0 %v426
        %v469 = vpop.f32.mrf.mxu0
        %v470 = vadd.f32 0.0, %v469
        %v471 = vpop.f32.mrf.mxu0
        %v472 = vpop.f32.mrf.mxu0
        %v473 = vadd.f32 0.0, %v472
        %v474 = vpop.f32.mrf.mxu0
        %475 = vmatprep.mubr.bf16.mxu0 0
        %476 = vmatmul.mubr.bf16.gmra.mxu0 %v429
        %v477 = vpop.f32.mrf.mxu0
        %v478 = vadd.f32 0.0, %v477
        %v479 = vpop.f32.mrf.mxu0
        %v480 = vpop.f32.mrf.mxu0
        %v481 = vadd.f32 0.0, %v480
        %v482 = vpop.f32.mrf.mxu0
        %483 = vdwg.mxu0
        %484 = vst [vmem:[%s317] sm:$0xff] %v470
        %485 = vst [vmem:[%s317 + $0x8] sm:$0xff] %v473
        %486 = vst [vmem:[%s317 + $0x10] sm:$0xff] %v478
        %487 = vst [vmem:[%s317 + $0x18] sm:$0xff] %v481
        %s488 = sand.u32 %s168, 1
        %s489 = scalar_lea.sflag [#allocation4], %s488
        %s490 = sand.u32 %s168, 1
        %s491 = smul.addr %s490, 32
        %s492 = scalar_lea.vmem [#allocation9], %s491
        // Predicated region
        $region53: #{tpu_custom_call.1} parent=39 // pred_check
          %p493 = pneg %p178
        $region54: #{tpu_custom_call.1} parent=39 // pred_check_branch
          %495 = sbr.rel (%p493) target = $region56
        $region55: #{tpu_custom_call.1} parent=39 // pred_region
          %s497 = ssub.s32 512, 512
          %498 = vsyncadd %s489, %s497
          %s499 = smul.addr %s29, 4
          %s500 = smul.addr %s28, 12
          %s501 = sadd.s32 %s499, %s500
          %s502 = smul.addr %s501, 128
          %s503 = scalar_lea.hbm %s5, %s502
          %s504 = sshll.u32 %s492, 4
          %s505 = int_to_ptr.vmem [resolvable:$true] %s504
          %510 = dma.vmem_to_hbm [thread:$0]  %s505, 512, %s503, %s489, 128, 128, 8
        $region56: #{tpu_custom_call.1} parent=39 // pred_fallthru
          _
      $region40: #{tpu_custom_call.1} parent=5 // pred_fallthru
        _
      %p511 = scmp.le.s32.totalorder 2, %s19
      // Predicated region
      $region57: #{tpu_custom_call.1} parent=5 // pred_check
        %p512 = pneg %p511
      $region58: #{tpu_custom_call.1} parent=5 // pred_check_branch
        %514 = sbr.rel (%p512) target = $region60
      $region59: #{tpu_custom_call.1} parent=5 // pred_region
        %s515 = ssub.s32 %s19, 2
        // Predicated region
        $region61: #{tpu_custom_call.1} parent=59 // pred_check
          %p516 = pneg %p184
        $region62: #{tpu_custom_call.1} parent=59 // pred_check_branch
          %518 = sbr.rel (%p516) target = $region64
        $region63: #{tpu_custom_call.1} parent=59 // pred_region
          %s519 = sand.u32 %s169, 1
          %s520 = scalar_lea.sflag [#allocation4], %s519
          %s521 = sand.u32 %s169, 1
          %s522 = smul.addr %s521, 32
          %s523 = scalar_lea.vmem [#allocation9], %s522
          %524 = dma.done %s520, 512
        $region64: #{tpu_custom_call.1} parent=59 // pred_fallthru
          _
      $region60: #{tpu_custom_call.1} parent=5 // pred_fallthru
        _
    $region6: #{tpu_custom_call.1} parent=1 // loop_footer
      %s23 = sadd.s32 1, %s19
    $region7: #{tpu_custom_call.1} parent=1 // loop_footer_branch
      %18 = sbr.rel target = $region3
    $region8: #{tpu_custom_call.1} parent=1 // loop_exit
      _
    %525 = vsyncpa [#allocation3], 1
    %s526 = scalar_lea.sflag [#allocation3], 1
    %527 = vsyncpa %s526, 1
    %528 = vsyncpa [#allocation4], 1
    %s529 = scalar_lea.sflag [#allocation4], 1
    %530 = vsyncpa %s529, 1
    %531 = vsyncpa [#allocation5], 1
    %s532 = scalar_lea.sflag [#allocation5], 1
    %533 = vsyncpa %s532, 1
    %534 = vsyncpa [#allocation7], 1

</llo_original>
